<compile_context>
chip_gen: v6e
topology: v6e:2x2x1
jax: 0.10.0
libtpu: 0.0.40
codegen_flags: <defaults>
</compile_context>

<pallas_src>
import functools

import jax
import jax.numpy as jnp
from jax.experimental import pallas as pl
from jax.experimental.pallas import tpu as pltpu

_LANES = 128


def _to_f32(a):
    # Widen narrow inputs in-kernel (HBM ships the native dtype).  Sub-32-bit
    # integer / bool inputs go through int32 first for a robust lowering.
    if jnp.issubdtype(a.dtype, jnp.integer) or a.dtype == jnp.bool_:
        a = a.astype(jnp.int32)
    return a.astype(jnp.float32)


def _pow_terms(x, t, p):
    if p == 2.0:
        return x * x, t * t
    if p == 1.0:
        return x, t
    return x ** p, t ** p          # float p supported (EUP exp/log path)


# ----------------------------------------------------------------------------
# Path A: whole sample fits in one block -> pack tile_b samples per grid step.
# Emits per-sample partial sums; smooth / ratio / reduction happen in the
# wrapper (identical math to the PyTorch module).
# ----------------------------------------------------------------------------
def _dice_small_kernel(pred_ref, tgt_ref, msk_ref, num_ref, den_ref, *, p):
    x = _to_f32(pred_ref[...])          # (tile_b, n_rows, 128)
    t = _to_f32(tgt_ref[...])
    v = _to_f32(msk_ref[...])
    xp, tp = _pow_terms(x, t, p)
    num = x * t * v
    den = (xp + tp) * v
    num_ref[...] = jnp.sum(jnp.sum(num, axis=2, keepdims=True), axis=1, keepdims=True)
    den_ref[...] = jnp.sum(jnp.sum(den, axis=2, keepdims=True), axis=1, keepdims=True)


# ----------------------------------------------------------------------------
# Path B: large samples -> per-sample accumulation over row tiles.
# Full-tile VMEM f32 accumulators (pure VPU per step); single XLU reduce at the
# end.  The last row tile may overhang the array: its out-of-range rows hold
# UNDEFINED data and are zeroed with an iota mask before accumulation.
# ----------------------------------------------------------------------------
def _dice_big_kernel(pred_ref, tgt_ref, msk_ref, num_ref, den_ref,
                     num_acc, den_acc, *, p, rows_valid_last, tile_r):
    s = pl.program_id(1)
    last = pl.num_programs(1) - 1

    @pl.when(s == 0)
    def _():
        num_acc[...] = jnp.zeros_like(num_acc)
        den_acc[...] = jnp.zeros_like(den_acc)

    x = _to_f32(pred_ref[...])          # (tile_r, 128)
    t = _to_f32(tgt_ref[...])
    v = _to_f32(msk_ref[...])
    xp, tp = _pow_terms(x, t, p)
    num_c = x * t * v
    den_c = (xp + tp) * v

    if rows_valid_last < tile_r:        # static: grid overhangs the row axis
        @pl.when(s == last)
        def _():
            rows = jax.lax.broadcasted_iota(jnp.int32, (tile_r, _LANES), 0)
            keep = rows < rows_valid_last
            num_acc[...] += jnp.where(keep, num_c, 0.0)
            den_acc[...] += jnp.where(keep, den_c, 0.0)

        @pl.when(s != last)
        def _():
            num_acc[...] += num_c
            den_acc[...] += den_c
    else:
        num_acc[...] += num_c
        den_acc[...] += den_c

    @pl.when(s == last)
    def _():
        num_ref[...] = jnp.sum(jnp.sum(num_acc[...], axis=0, keepdims=True),
                               axis=1, keepdims=True)
        den_ref[...] = jnp.sum(jnp.sum(den_acc[...], axis=0, keepdims=True),
                               axis=1, keepdims=True)


def binary_dice_loss(predict, target, valid_mask, *, smooth=1.0, p=2,
                     reduction="mean", tile_rows=2048, buffer_count=2):
    """Binary dice loss, matching BinaryDiceLoss.forward.

    predict/target/valid_mask: (B, *), any dtype -- pass them at their NATIVE
    dtype (bf16 / uint8 / bool are fine); widening to f32 happens inside the
    kernel so narrow inputs are DMA'd at narrow width.
    """
    assert predict.shape[0] == target.shape[0], \
        "predict & target batch size don't match"
    B = predict.shape[0]
    p = float(p)            # do NOT truncate: float p supported
    smooth = float(smooth)

    pr = predict.reshape(B, -1)
    tg = target.reshape(B, -1)
    vm = valid_mask.reshape(B, -1)
    M = pr.shape[1]

    # Lane-dense layout (B, n_rows, 128).  If M % 128 == 0 (typical segmentation
    # shapes) this is a free, zero-copy view.  Otherwise we pad by < 128
    # elements per sample (one small XLA copy, unavoidable for a lane-dense
    # layout; padded zeros contribute exactly 0).  Row raggedness w.r.t. the
    # tile is handled in-kernel, never by padding.
    n_rows = pl.cdiv(M, _LANES)
    m128 = n_rows * _LANES

    def _prep(a):
        if m128 != M:
            a = jnp.pad(a, ((0, 0), (0, m128 - M)))
        return a.reshape(B, n_rows, _LANES)

    pr, tg, vm = _prep(pr), _prep(tg), _prep(vm)

    # v7x headroom: full-tile f32 accumulators scale with tile_rows -> cap at
    # 4096; round to a multiple of 32 sublanes so bf16/int8 overrides stay legal.
    tile_rows = max(32, min(int(tile_rows), 4096))
    tile_rows = (tile_rows // 32) * 32

    # Optional deeper input buffering (perf review: try Buffered(3)); default 2
    # keeps the standard double-buffered pipeline.
    pipe = {} if buffer_count == 2 else {"pipeline_mode": pl.Buffered(buffer_count)}

    if n_rows <= tile_rows:
        # ---- Path A: whole sample per block; tile_b samples per grid step ----
        tile_b = max(1, min(B, tile_rows // max(n_rows, 1)))
        in_spec = pl.BlockSpec((tile_b, n_rows, _LANES), lambda i: (i, 0, 0), **pipe)
        out_spec = pl.BlockSpec((tile_b, 1, 1), lambda i: (i, 0, 0))
        num, den = pl.pallas_call(
            functools.partial(_dice_small_kernel, p=p),
            out_shape=(jax.ShapeDtypeStruct((B, 1, 1), jnp.float32),
                       jax.ShapeDtypeStruct((B, 1, 1), jnp.float32)),
            grid_spec=pltpu.PrefetchScalarGridSpec(
                num_scalar_prefetch=0,
                grid=(pl.cdiv(B, tile_b),),
                in_specs=[in_spec, in_spec, in_spec],
                out_specs=[out_spec, out_spec],
            ),
            compiler_params=pltpu.CompilerParams(
                dimension_semantics=("parallel",)),
        )(pr, tg, vm)
        num = num.reshape(B)
        den = den.reshape(B)
    else:
        # ---- Path B: multi-step accumulation over row tiles ----
        # Megacore (v7x): batch is the only parallel axis; with B == 1 split the
        # row axis into two pseudo-samples (free view) so both TensorCores work.
        nsplit = 2 if (B == 1 and n_rows % 2 == 0) else 1
        G = B * nsplit
        rows_g = n_rows // nsplit
        pr = pr.reshape(G, rows_g, _LANES)
        tg = tg.reshape(G, rows_g, _LANES)
        vm = vm.reshape(G, rows_g, _LANES)

        tile_r = min(tile_rows, rows_g)          # == rows_g (full dim) is legal
        n_steps = pl.cdiv(rows_g, tile_r)
        rows_valid_last = rows_g - (n_steps - 1) * tile_r

        in_spec = pl.BlockSpec((None, tile_r, _LANES), lambda g, s: (g, s, 0), **pipe)
        out_spec = pl.BlockSpec((None, 1, 1), lambda g, s: (g, 0, 0))
        num, den = pl.pallas_call(
            functools.partial(_dice_big_kernel, p=p,
                              rows_valid_last=rows_valid_last, tile_r=tile_r),
            out_shape=(jax.ShapeDtypeStruct((G, 1, 1), jnp.float32),
                       jax.ShapeDtypeStruct((G, 1, 1), jnp.float32)),
            grid_spec=pltpu.PrefetchScalarGridSpec(
                num_scalar_prefetch=0,
                grid=(G, n_steps),
                in_specs=[in_spec, in_spec, in_spec],
                out_specs=[out_spec, out_spec],
                scratch_shapes=[pltpu.VMEM((tile_r, _LANES), jnp.float32),
                                pltpu.VMEM((tile_r, _LANES), jnp.float32)],
            ),
            compiler_params=pltpu.CompilerParams(
                dimension_semantics=("parallel", "arbitrary")),
        )(pr, tg, vm)
        num = num.reshape(B, nsplit).sum(axis=1)
        den = den.reshape(B, nsplit).sum(axis=1)

    loss = 1.0 - (2.0 * num + smooth) / (den + smooth)
    if reduction == "mean":
        return jnp.mean(loss)
    elif reduction == "sum":
        return jnp.sum(loss)
    elif reduction == "none":
        return loss
    else:
        raise Exception("Unexpected reduction {}".format(reduction))


def _reference_loss(predict, target, valid_mask, smooth=1.0, p=2, reduction="mean"):
    # pure-JAX reference reproducing the PyTorch module exactly
    B = predict.shape[0]
    p = float(p)
    pr = predict.reshape(B, -1).astype(jnp.float32)
    tg = target.reshape(B, -1).astype(jnp.float32)
    vm = valid_mask.reshape(B, -1).astype(jnp.float32)
    num = jnp.sum(pr * tg * vm, axis=1) * 2 + smooth
    den = jnp.sum((pr ** p + tg ** p) * vm, axis=1) + smooth
    loss = 1.0 - num / den
    if reduction == "mean":
        return jnp.mean(loss)
    if reduction == "sum":
        return jnp.sum(loss)
    return loss


if __name__ == "__main__":
    key = jax.random.PRNGKey(0)
    ks = jax.random.split(key, 16)

    def check(predict, target, valid_mask, *, name, **kw):
        out = jax.block_until_ready(
            binary_dice_loss(predict, target, valid_mask, **kw))
        ref = jax.block_until_ready(_reference_loss(
            predict, target, valid_mask,
            smooth=kw.get("smooth", 1.0), p=kw.get("p", 2),
            reduction=kw.get("reduction", "mean")))
        assert jnp.allclose(out, ref, rtol=1e-4, atol=1e-5), (name, out, ref)

    # 1) canonical small case (B, H, W), single-block path
    predict = jax.nn.sigmoid(jax.random.normal(ks[0], (2, 16, 16), jnp.float32))
    target = jax.random.randint(ks[1], (2, 16, 16), 0, 2).astype(jnp.float32)
    vmask = (jax.random.uniform(ks[2], (2, 16, 16)) > 0.3).astype(jnp.float32)
    check(predict, target, vmask, name="small_f32")

    # 2) narrow dtypes shipped as-is (bf16 target, uint8 mask), reduction='none'
    predict = jax.nn.sigmoid(jax.random.normal(ks[3], (3, 64, 64), jnp.float32))
    target = jax.random.randint(ks[4], (3, 64, 64), 0, 2).astype(jnp.bfloat16)
    vmask = (jax.random.uniform(ks[5], (3, 64, 64)) > 0.3).astype(jnp.uint8)
    check(predict, target, vmask, name="narrow_dtypes", reduction="none")

    # 3) per-sample size not a multiple of 128 (small lane pad) + float p
    predict = jax.nn.sigmoid(jax.random.normal(ks[6], (2, 13, 17), jnp.float32))
    target = jax.random.randint(ks[7], (2, 13, 17), 0, 2).astype(jnp.float32)
    vmask = (jax.random.uniform(ks[8], (2, 13, 17)) > 0.3).astype(jnp.float32)
    check(predict, target, vmask, name="ragged_lanes_float_p", p=1.5, reduction="sum")

    # 4) multi-step path with ragged last row tile (in-kernel iota mask)
    predict = jax.nn.sigmoid(jax.random.normal(ks[9], (2, 40, 128), jnp.float32))
    target = jax.random.randint(ks[10], (2, 40, 128), 0, 2).astype(jnp.float32)
    vmask = (jax.random.uniform(ks[11], (2, 40, 128)) > 0.3).astype(jnp.float32)
    check(predict, target, vmask, name="multi_step_ragged", tile_rows=32)

    # 5) B == 1: row axis split into two pseudo-samples (megacore on v7x)
    predict = jax.nn.sigmoid(jax.random.normal(ks[12], (1, 80, 128), jnp.float32))
    target = jax.random.randint(ks[13], (1, 80, 128), 0, 2).astype(jnp.float32)
    vmask = (jax.random.uniform(ks[14], (1, 80, 128)) > 0.3).astype(jnp.float32)
    check(predict, target, vmask, name="batch1_split", tile_rows=32)

    print("KERNEL_OK")
</pallas_src>

<mosaic_0001>
module attributes {stable_mosaic.version = 11 : i64} {
  func.func @_dice_small_kernel(%arg0: i32, %arg1: memref<2x2x128xf32, #tpu.memory_space<vmem>>, %arg2: memref<2x2x128xf32, #tpu.memory_space<vmem>>, %arg3: memref<2x2x128xf32, #tpu.memory_space<vmem>>, %arg4: memref<2x1x1xf32, #tpu.memory_space<vmem>>, %arg5: memref<2x1x1xf32, #tpu.memory_space<vmem>>) attributes {dimension_semantics = [#tpu.dimension_semantics<parallel>], iteration_bounds = array<i64: 1>, scalar_prefetch = 0 : i64, scratch_operands = 0 : i64, tpu.core_type = #tpu.core_type<tc>, window_params = [{transform_indices = @transform_0, window_bounds = array<i64: 2, 2, 128>}, {transform_indices = @transform_1, window_bounds = array<i64: 2, 2, 128>}, {transform_indices = @transform_2, window_bounds = array<i64: 2, 2, 128>}, {transform_indices = @transform_3, window_bounds = array<i64: 2, 1, 1>}, {transform_indices = @transform_4, window_bounds = array<i64: 2, 1, 1>}]} {
    %c0 = arith.constant 0 : index
    %c0_0 = arith.constant 0 : index
    %c0_1 = arith.constant 0 : index
    %0 = vector.load %arg1[%c0, %c0_0, %c0_1] : memref<2x2x128xf32, #tpu.memory_space<vmem>>, vector<2x2x128xf32>
    %c0_2 = arith.constant 0 : index
    %c0_3 = arith.constant 0 : index
    %c0_4 = arith.constant 0 : index
    %1 = vector.load %arg2[%c0_2, %c0_3, %c0_4] : memref<2x2x128xf32, #tpu.memory_space<vmem>>, vector<2x2x128xf32>
    %c0_5 = arith.constant 0 : index
    %c0_6 = arith.constant 0 : index
    %c0_7 = arith.constant 0 : index
    %2 = vector.load %arg3[%c0_5, %c0_6, %c0_7] : memref<2x2x128xf32, #tpu.memory_space<vmem>>, vector<2x2x128xf32>
    %3 = arith.mulf %0, %0 : vector<2x2x128xf32>
    %4 = arith.mulf %1, %1 : vector<2x2x128xf32>
    %5 = arith.mulf %0, %1 : vector<2x2x128xf32>
    %6 = arith.mulf %5, %2 : vector<2x2x128xf32>
    %7 = arith.addf %3, %4 : vector<2x2x128xf32>
    %8 = arith.mulf %7, %2 : vector<2x2x128xf32>
    %cst = arith.constant dense<0.000000e+00> : vector<2x2xf32>
    %9 = vector.multi_reduction <add>, %6, %cst [2] : vector<2x2x128xf32> to vector<2x2xf32>
    %10 = vector.shape_cast %9 : vector<2x2xf32> to vector<2x2x1xf32>
    %cst_8 = arith.constant dense<0.000000e+00> : vector<2x1xf32>
    %11 = vector.multi_reduction <add>, %10, %cst_8 [1] : vector<2x2x1xf32> to vector<2x1xf32>
    %12 = vector.shape_cast %11 : vector<2x1xf32> to vector<2x1x1xf32>
    %c0_9 = arith.constant 0 : index
    %c0_10 = arith.constant 0 : index
    %c0_11 = arith.constant 0 : index
    %13 = vector.load %arg4[%c0_9, %c0_10, %c0_11] : memref<2x1x1xf32, #tpu.memory_space<vmem>>, vector<2x1x1xf32>
    tpu.vector_store %arg4[%c0_9, %c0_10, %c0_11], %12 {strides = array<i32>} : memref<2x1x1xf32, #tpu.memory_space<vmem>>, vector<2x1x1xf32>,
    %cst_12 = arith.constant dense<0.000000e+00> : vector<2x2xf32>
    %14 = vector.multi_reduction <add>, %8, %cst_12 [2] : vector<2x2x128xf32> to vector<2x2xf32>
    %15 = vector.shape_cast %14 : vector<2x2xf32> to vector<2x2x1xf32>
    %cst_13 = arith.constant dense<0.000000e+00> : vector<2x1xf32>
    %16 = vector.multi_reduction <add>, %15, %cst_13 [1] : vector<2x2x1xf32> to vector<2x1xf32>
    %17 = vector.shape_cast %16 : vector<2x1xf32> to vector<2x1x1xf32>
    %c0_14 = arith.constant 0 : index
    %c0_15 = arith.constant 0 : index
    %c0_16 = arith.constant 0 : index
    %18 = vector.load %arg5[%c0_14, %c0_15, %c0_16] : memref<2x1x1xf32, #tpu.memory_space<vmem>>, vector<2x1x1xf32>
    tpu.vector_store %arg5[%c0_14, %c0_15, %c0_16], %17 {strides = array<i32>} : memref<2x1x1xf32, #tpu.memory_space<vmem>>, vector<2x1x1xf32>,
    return
  }
  func.func @transform_0(%arg0: i32) -> (i32, i32, i32) {
    %c0_i32 = arith.constant 0 : i32
    %c0_i32_0 = arith.constant 0 : i32
    %c0_i32_1 = arith.constant 0 : i32
    return %arg0, %c0_i32, %c0_i32_0 : i32, i32, i32
  }
  func.func @transform_1(%arg0: i32) -> (i32, i32, i32) {
    %c0_i32 = arith.constant 0 : i32
    %c0_i32_0 = arith.constant 0 : i32
    %c0_i32_1 = arith.constant 0 : i32
    return %arg0, %c0_i32, %c0_i32_0 : i32, i32, i32
  }
  func.func @transform_2(%arg0: i32) -> (i32, i32, i32) {
    %c0_i32 = arith.constant 0 : i32
    %c0_i32_0 = arith.constant 0 : i32
    %c0_i32_1 = arith.constant 0 : i32
    return %arg0, %c0_i32, %c0_i32_0 : i32, i32, i32
  }
  func.func @transform_3(%arg0: i32) -> (i32, i32, i32) {
    %c0_i32 = arith.constant 0 : i32
    %c0_i32_0 = arith.constant 0 : i32
    %c0_i32_1 = arith.constant 0 : i32
    return %arg0, %c0_i32, %c0_i32_0 : i32, i32, i32
  }
  func.func @transform_4(%arg0: i32) -> (i32, i32, i32) {
    %c0_i32 = arith.constant 0 : i32
    %c0_i32_0 = arith.constant 0 : i32
    %c0_i32_1 = arith.constant 0 : i32
    return %arg0, %c0_i32, %c0_i32_0 : i32, i32, i32
  }
}

</mosaic_0001>

<llo_original>
// kernel: tpu_custom_call.1
$region0: #{tpu_custom_call.1}
  #allocation0 [shape = 'u32[]', space=smem, size = 0x4, offset = 0x4, fixed_abs, tag = 'smem constant byte address 0x4 - core index']
  #allocation1 [shape = 'u32[144,128]{1,0:T(1,128)}', space=vmem, size = 0x12000, scoped, tag = 'internal scratch']
  %s0 = inlined_call_operand.hbm [shape: f32[2,2,128], index: 0, kind: input, shape index: {}]
  %s1 = inlined_call_operand.hbm [shape: f32[2,2,128], index: 1, kind: input, shape index: {}]
  %s2 = inlined_call_operand.hbm [shape: f32[2,2,128], index: 2, kind: input, shape index: {}]
  %s3 = inlined_call_operand.vmem [shape: f32[2,1,1], index: 3, kind: output, shape index: {0}]
  %s4 = inlined_call_operand.vmem [shape: f32[2,1,1], index: 4, kind: output, shape index: {1}]
  %5 = xla_tuple %s3, %s4
  %s6 = sld [smem:[#allocation0]]
  $region42: #{tpu_custom_call.1} parent=0
    _
  %s8 = ssub.s32 1, %s6
  %s9 = scalar_select 0, %s8, %s6
  $region1: #{tpu_custom_call.1} parent=0
    #allocation2 [shape = 'u8[2048]{0}', space=vmem, size = 0x800, scoped, tag = 'input window, operand 0, single buffered']
    #allocation3 [shape = 's32[1]{0}', space=sflag, size = 0x4, scoped, tag = 'scoped memory for tpu_custom_call.1']
    #allocation4 [shape = 'u8[2048]{0}', space=vmem, size = 0x800, scoped, tag = 'input window, operand 1, single buffered']
    #allocation5 [shape = 's32[1]{0}', space=sflag, size = 0x4, scoped, tag = 'scoped memory for tpu_custom_call.1']
    #allocation6 [shape = 'u8[2048]{0}', space=vmem, size = 0x800, scoped, tag = 'input window, operand 2, single buffered']
    %10 = vsyncpa [#allocation3], 0
    %11 = vsyncpa [#allocation5], 0
    // Predicated region
    $region2: #{tpu_custom_call.1} parent=1 // pred_check
      _
    $region3: #{tpu_custom_call.1} parent=1 // pred_check_branch
      %13 = sbr.rel (0) target = $region5
    $region4: #{tpu_custom_call.1} parent=1 // pred_region
      %s15 = ssub.s32 64, 64
      %16 = vsyncadd [#allocation3], %s15
      %s17 = sshll.u32 [#allocation2], 4
      %s18 = int_to_ptr.vmem [resolvable:$true] %s17
      %23 = dma.hbm_to_vmem [thread:$0]  %s0, 64, %s18, [#allocation3], 32, 32, 2
    $region5: #{tpu_custom_call.1} parent=1 // pred_fallthru
      _
    // Predicated region
    $region6: #{tpu_custom_call.1} parent=1 // pred_check
      _
    $region7: #{tpu_custom_call.1} parent=1 // pred_check_branch
      %25 = sbr.rel (0) target = $region9
    $region8: #{tpu_custom_call.1} parent=1 // pred_region
      %s27 = ssub.s32 64, 64
      %28 = vsyncadd [#allocation5], %s27
      %s29 = sshll.u32 [#allocation4], 4
      %s30 = int_to_ptr.vmem [resolvable:$true] %s29
      %35 = dma.hbm_to_vmem [thread:$0]  %s1, 64, %s30, [#allocation5], 32, 32, 2
    $region9: #{tpu_custom_call.1} parent=1 // pred_fallthru
      _
    // Predicated region
    $region10: #{tpu_custom_call.1} parent=1 // pred_check
      _
    $region11: #{tpu_custom_call.1} parent=1 // pred_check_branch
      %37 = sbr.rel (0) target = $region13
    $region12: #{tpu_custom_call.1} parent=1 // pred_region
      %s39 = ssub.s32 64, 64
      %40 = vsyncadd [#allocation5], %s39
      %s41 = sshll.u32 [#allocation6], 4
      %s42 = int_to_ptr.vmem [resolvable:$true] %s41
      %47 = dma.hbm_to_vmem [thread:$0]  %s2, 64, %s42, [#allocation5], 32, 32, 2
    $region13: #{tpu_custom_call.1} parent=1 // pred_fallthru
      _
    // Predicated region
    $region14: #{tpu_custom_call.1} parent=1 // pred_check
      _
    $region15: #{tpu_custom_call.1} parent=1 // pred_check_branch
      %49 = sbr.rel (0) target = $region17
    $region16: #{tpu_custom_call.1} parent=1 // pred_region
      %50 = dma.done [#allocation3], 64
    $region17: #{tpu_custom_call.1} parent=1 // pred_fallthru
      _
    // Predicated region
    $region18: #{tpu_custom_call.1} parent=1 // pred_check
      _
    $region19: #{tpu_custom_call.1} parent=1 // pred_check_branch
      %52 = sbr.rel (0) target = $region21
    $region20: #{tpu_custom_call.1} parent=1 // pred_region
      %53 = dma.done [#allocation5], 64
    $region21: #{tpu_custom_call.1} parent=1 // pred_fallthru
      _
    // Predicated region
    $region22: #{tpu_custom_call.1} parent=1 // pred_check
      _
    $region23: #{tpu_custom_call.1} parent=1 // pred_check_branch
      %55 = sbr.rel (0) target = $region25
    $region24: #{tpu_custom_call.1} parent=1 // pred_region
      %56 = dma.done [#allocation5], 64
    $region25: #{tpu_custom_call.1} parent=1 // pred_fallthru
      _
    %v57 = vld [vmem:[#allocation2] sm:$0x3]
    %v58 = vld [vmem:[#allocation2 + $0x2] sm:$0x3]
    %v59 = vld [vmem:[#allocation4] sm:$0x3]
    %v60 = vld [vmem:[#allocation4 + $0x2] sm:$0x3]
    %v61 = vld [vmem:[#allocation6] sm:$0x3]
    %v62 = vld [vmem:[#allocation6 + $0x2] sm:$0x3]
    %v63 = vmul.f32 %v57, %v57
    %v64 = vmul.f32 %v58, %v58
    %v65 = vmul.f32 %v59, %v59
    %v66 = vmul.f32 %v60, %v60
    %v67 = vmul.f32 %v57, %v59
    %v68 = vmul.f32 %v58, %v60
    %v69 = vmul.f32 %v67, %v61
    %v70 = vmul.f32 %v68, %v62
    %v71 = vadd.f32 %v63, %v65
    %v72 = vadd.f32 %v64, %v66
    %v73 = vmul.f32 %v71, %v61
    %v74 = vmul.f32 %v72, %v62
    %vm75 = vcmask 1041408
    %v76 = vsel %vm75, %v69, 0.0
    %77 = vadd.xlane.f32.xlu0 %v76
    %v78 = vpop.xlane.xlu0 %77
    %v79 = vsel %vm75, %v70, 0.0
    %80 = vadd.xlane.f32.xlu0 %v79
    %v81 = vpop.xlane.xlu0 %80
    %v82 = vsel %vm75, %v78, 0.0
    %v83 = vrot.slane %v82, 4
    %v84 = vadd.f32 %v82, %v83
    %v85 = vrot.slane %v84, 2
    %v86 = vadd.f32 %v84, %v85
    %v87 = vrot.slane %v86, 1
    %v88 = vadd.f32 %v86, %v87
    %v89 = vsel %vm75, %v81, 0.0
    %v90 = vrot.slane %v89, 4
    %v91 = vadd.f32 %v89, %v90
    %v92 = vrot.slane %v91, 2
    %v93 = vadd.f32 %v91, %v92
    %v94 = vrot.slane %v93, 1
    %v95 = vadd.f32 %v93, %v94
    %vm96 = vcmask 0
    %97 = vst.msk [vmem:[%s3] sm:$0x1] %vm96, %v88
    %98 = vst.msk [vmem:[%s3 + $0x1] sm:$0x1] %vm96, %v95
    %v99 = vsel %vm75, %v73, 0.0
    %100 = vadd.xlane.f32.xlu0 %v99
    %v101 = vpop.xlane.xlu0 %100
    %v102 = vsel %vm75, %v74, 0.0
    %103 = vadd.xlane.f32.xlu0 %v102
    %v104 = vpop.xlane.xlu0 %103
    %v105 = vsel %vm75, %v101, 0.0
    %v106 = vrot.slane %v105, 4
    %v107 = vadd.f32 %v105, %v106
    %v108 = vrot.slane %v107, 2
    %v109 = vadd.f32 %v107, %v108
    %v110 = vrot.slane %v109, 1
    %v111 = vadd.f32 %v109, %v110
    %v112 = vsel %vm75, %v104, 0.0
    %v113 = vrot.slane %v112, 4
    %v114 = vadd.f32 %v112, %v113
    %v115 = vrot.slane %v114, 2
    %v116 = vadd.f32 %v114, %v115
    %v117 = vrot.slane %v116, 1
    %v118 = vadd.f32 %v116, %v117
    %119 = vst.msk [vmem:[%s4] sm:$0x1] %vm96, %v111
    %120 = vst.msk [vmem:[%s4 + $0x1] sm:$0x1] %vm96, %v118
    // Predicated region
    $region26: #{tpu_custom_call.1} parent=1 // pred_check
      _
    $region27: #{tpu_custom_call.1} parent=1 // pred_check_branch
      %122 = sbr.rel (0) target = $region29
    $region28: #{tpu_custom_call.1} parent=1 // pred_region
      _
    $region29: #{tpu_custom_call.1} parent=1 // pred_fallthru
      _
    // Predicated region
    $region30: #{tpu_custom_call.1} parent=1 // pred_check
      _
    $region31: #{tpu_custom_call.1} parent=1 // pred_check_branch
      %124 = sbr.rel (0) target = $region33
    $region32: #{tpu_custom_call.1} parent=1 // pred_region
      _
    $region33: #{tpu_custom_call.1} parent=1 // pred_fallthru
      _
    // Predicated region
    $region34: #{tpu_custom_call.1} parent=1 // pred_check
      _
    $region35: #{tpu_custom_call.1} parent=1 // pred_check_branch
      %126 = sbr.rel (0) target = $region37
    $region36: #{tpu_custom_call.1} parent=1 // pred_region
      _
    $region37: #{tpu_custom_call.1} parent=1 // pred_fallthru
      _
    // Predicated region
    $region38: #{tpu_custom_call.1} parent=1 // pred_check
      _
    $region39: #{tpu_custom_call.1} parent=1 // pred_check_branch
      %128 = sbr.rel (0) target = $region41
    $region40: #{tpu_custom_call.1} parent=1 // pred_region
      _
    $region41: #{tpu_custom_call.1} parent=1 // pred_fallthru
      _
    %129 = vsyncpa [#allocation3], 1
    %130 = vsyncpa [#allocation5], 1

</llo_original>
